<compile_context>
chip_gen: v5e
topology: v5e:2x2
jax: 0.10.0
libtpu: 0.0.40
codegen_flags: <defaults>
</compile_context>

<pallas_src>
import jax
import jax.numpy as jnp
from jax.experimental import pallas as pl
from jax.experimental.pallas import tpu as pltpu


def _cdiv(a, b):
    return (a + b - 1) // b


def _round_up(n, m):
    return ((n + m - 1) // m) * m


def _compute_batch_tiling(B, max_tile=4096, min_tile=128):
    """Balanced batch tiling: big tiles (amortize per-step overhead) without a
    mostly-padded last tile, and >=2 tiles for v7x megacore once B is big enough."""
    num_tiles = _cdiv(B, max_tile)
    if num_tiles < 2 and B >= 2 * min_tile:
        num_tiles = 2
    tile_b = _round_up(_cdiv(B, num_tiles), min_tile)
    num_tiles = _cdiv(B, tile_b)
    b_pad = num_tiles * tile_b
    return tile_b, num_tiles, b_pad


def valuenet_kernel(x_ref, w1_ref, b1_ref, w2_ref, b2_ref, w3_ref, b3_ref, out_ref):
    # Layer 1: [TILE_B, S]bf16 @ [S, 256]bf16 -> [TILE_B, 256]f32   (MXU, f32 accumulate)
    h1 = jnp.dot(x_ref[...], w1_ref[...], preferred_element_type=jnp.float32)
    h1 = jnp.maximum(h1 + b1_ref[...], 0.0)                     # f32 epilogue on VPU
    # Layer 2: [TILE_B, 256]bf16 @ [256, 128]bf16 -> [TILE_B, 128]f32   (MXU)
    h2 = jnp.dot(h1.astype(jnp.bfloat16), w2_ref[...],
                 preferred_element_type=jnp.float32)
    h2 = jnp.maximum(h2 + b2_ref[...], 0.0)                     # f32 epilogue on VPU
    # Layer 3 (N=1): f32 VPU multiply + XLU lane-reduce instead of a 1-column MXU pass.
    v = jnp.sum(h2 * w3_ref[...], axis=-1) + b3_ref[0]          # [TILE_B]
    # Lane-dense store: batch lives on the 128-lane axis of the (1, TILE_B) output block.
    out_ref[...] = v[None, :].astype(out_ref.dtype)


def valuenet_forward(x, params, *, max_tile=4096):
    w1, b1, w2, b2, w3, b3 = params
    B, state_dim = x.shape
    h1_dim = w1.shape[1]
    h2_dim = w2.shape[1]

    tile_b, num_tiles, b_pad = _compute_batch_tiling(B, max_tile=max_tile)

    # bf16 feed for the MXU dots (f32 accumulation retained inside the kernel).
    x_bf = x.astype(jnp.bfloat16)
    if b_pad != B:
        x_bf = jnp.pad(x_bf, ((0, b_pad - B), (0, 0)))
    w1_bf = w1.astype(jnp.bfloat16)
    w2_bf = w2.astype(jnp.bfloat16)

    # Final layer weight as a broadcastable f32 row; final bias as an SMEM scalar.
    w3_row = w3.reshape(1, h2_dim).astype(jnp.float32)
    b3_s = b3.reshape(1).astype(jnp.float32)

    # Advisory cost estimate for XLA's scheduler.
    flops = 2 * b_pad * (state_dim * h1_dim + h1_dim * h2_dim + h2_dim)
    bytes_accessed = (
        b_pad * state_dim * 2                       # x stream (bf16)
        + state_dim * h1_dim * 2 + h1_dim * h2_dim * 2  # W1, W2 (bf16)
        + (h1_dim + h2_dim + h2_dim + 1) * 4        # b1, b2, w3 row, b3 (f32)
        + b_pad * 4                                 # output (f32)
    )
    cost = pl.CostEstimate(flops=flops, transcendentals=0,
                           bytes_accessed=bytes_accessed)

    out = pl.pallas_call(
        valuenet_kernel,
        out_shape=jax.ShapeDtypeStruct((1, b_pad), jnp.float32),
        grid_spec=pl.GridSpec(
            grid=(num_tiles,),
            in_specs=[
                pl.BlockSpec((tile_b, state_dim), lambda i: (i, 0)),   # x: streamed per tile
                pl.BlockSpec((state_dim, h1_dim), lambda i: (0, 0)),   # W1: resident
                pl.BlockSpec((1, h1_dim), lambda i: (0, 0)),           # b1: resident
                pl.BlockSpec((h1_dim, h2_dim), lambda i: (0, 0)),      # W2: resident
                pl.BlockSpec((1, h2_dim), lambda i: (0, 0)),           # b2: resident
                pl.BlockSpec((1, h2_dim), lambda i: (0, 0)),           # w3 row: resident
                pl.BlockSpec(memory_space=pltpu.MemorySpace.SMEM),     # b3: scalar in SMEM
            ],
            out_specs=pl.BlockSpec((1, tile_b), lambda i: (0, i)),     # lane-dense output
        ),
        compiler_params=pltpu.CompilerParams(
            dimension_semantics=("parallel",),    # megacore split across batch tiles (v7x)
            vmem_limit_bytes=32 * 1024 * 1024,    # large tiles also fit v5e's scoped VMEM
        ),
        cost_estimate=cost,
    )(x_bf, w1_bf, b1, w2_bf, b2, w3_row, b3_s)

    return out[0, :B].reshape(B, 1)


def init_params(key, state_dim):
    # Matches PyTorch nn.Linear default init: U(-1/sqrt(fan_in), 1/sqrt(fan_in))
    def linear(key, fan_in, fan_out):
        kw, kb = jax.random.split(key)
        bound = 1.0 / jnp.sqrt(float(fan_in))
        w = jax.random.uniform(kw, (fan_in, fan_out), jnp.float32, -bound, bound)
        b = jax.random.uniform(kb, (1, fan_out), jnp.float32, -bound, bound)
        return w, b

    k1, k2, k3 = jax.random.split(key, 3)
    w1, b1 = linear(k1, state_dim, 256)
    w2, b2 = linear(k2, 256, 128)
    w3, b3 = linear(k3, 128, 1)
    return (w1, b1, w2, b2, w3, b3)


def reference_forward_bf16(x, params):
    """Mirrors the kernel's numerics: bf16 MXU inputs, f32 accumulation/epilogues."""
    w1, b1, w2, b2, w3, b3 = params
    h1 = jnp.dot(x.astype(jnp.bfloat16), w1.astype(jnp.bfloat16),
                 preferred_element_type=jnp.float32)
    h1 = jnp.maximum(h1 + b1, 0.0)
    h2 = jnp.dot(h1.astype(jnp.bfloat16), w2.astype(jnp.bfloat16),
                 preferred_element_type=jnp.float32)
    h2 = jnp.maximum(h2 + b2, 0.0)
    return jnp.sum(h2 * w3.reshape(1, -1), axis=-1, keepdims=True) + b3


def reference_forward_f32(x, params):
    """Pure f32 reference of the original PyTorch module (semantics sanity check)."""
    w1, b1, w2, b2, w3, b3 = params
    hp = jax.lax.Precision.HIGHEST
    h1 = jnp.maximum(jnp.dot(x, w1, precision=hp) + b1, 0.0)
    h2 = jnp.maximum(jnp.dot(h1, w2, precision=hp) + b2, 0.0)
    return jnp.dot(h2, w3, precision=hp) + b3


if __name__ == "__main__":
    key = jax.random.PRNGKey(0)
    k_params, k_x = jax.random.split(key)

    batch = 8
    state_dim = 32
    params = init_params(k_params, state_dim)
    x = jax.random.normal(k_x, (batch, state_dim), jnp.float32)

    out = valuenet_forward(x, params)
    out = jax.block_until_ready(out)
    assert out.shape == (batch, 1), out.shape

    # Tight check against a reference with matching (bf16-feed, f32-accumulate) numerics.
    ref_bf16 = reference_forward_bf16(x, params)
    assert jnp.allclose(out, ref_bf16, atol=1e-4, rtol=1e-4), (out, ref_bf16)

    # Loose sanity check against the exact-f32 module semantics (bf16 rounding tolerance).
    ref_f32 = reference_forward_f32(x, params)
    assert jnp.allclose(out, ref_f32, atol=5e-2, rtol=5e-2), (out, ref_f32)

    print("KERNEL_OK")
</pallas_src>

<mosaic_0001>
module attributes {stable_mosaic.version = 11 : i64} {
  func.func @valuenet_kernel(%arg0: i32, %arg1: memref<128x32xbf16, #tpu.memory_space<vmem>>, %arg2: memref<32x256xbf16, #tpu.memory_space<vmem>>, %arg3: memref<1x256xf32, #tpu.memory_space<vmem>>, %arg4: memref<256x128xbf16, #tpu.memory_space<vmem>>, %arg5: memref<1x128xf32, #tpu.memory_space<vmem>>, %arg6: memref<1x128xf32, #tpu.memory_space<vmem>>, %arg7: memref<1xf32, #tpu.memory_space<smem>>, %arg8: memref<1x128xf32, #tpu.memory_space<vmem>>) attributes {dimension_semantics = [#tpu.dimension_semantics<parallel>], iteration_bounds = array<i64: 1>, scalar_prefetch = 0 : i64, scratch_operands = 0 : i64, tpu.core_type = #tpu.core_type<tc>, window_params = [{transform_indices = @transform_0, window_bounds = array<i64: 128, 32>}, {pipeline_mode = #tpu.pipeline_mode<synchronous>, transform_indices = @transform_1, window_bounds = array<i64: 32, 256>}, {pipeline_mode = #tpu.pipeline_mode<synchronous>, transform_indices = @transform_2, window_bounds = array<i64: 1, 256>}, {pipeline_mode = #tpu.pipeline_mode<synchronous>, transform_indices = @transform_3, window_bounds = array<i64: 256, 128>}, {pipeline_mode = #tpu.pipeline_mode<synchronous>, transform_indices = @transform_4, window_bounds = array<i64: 1, 128>}, {pipeline_mode = #tpu.pipeline_mode<synchronous>, transform_indices = @transform_5, window_bounds = array<i64: 1, 128>}, {transform_indices = @transform_6, window_bounds = array<i64: 1>}, {transform_indices = @transform_7, window_bounds = array<i64: 1, 128>}]} {
    %c0 = arith.constant 0 : index
    %c0_0 = arith.constant 0 : index
    %0 = vector.load %arg1[%c0, %c0_0] : memref<128x32xbf16, #tpu.memory_space<vmem>>, vector<128x32xbf16>
    %c0_1 = arith.constant 0 : index
    %c0_2 = arith.constant 0 : index
    %1 = vector.load %arg2[%c0_1, %c0_2] : memref<32x256xbf16, #tpu.memory_space<vmem>>, vector<32x256xbf16>
    %cst = arith.constant dense<0.000000e+00> : vector<128x256xf32>
    %2 = tpu.matmul %0, %1, %cst {dimension_numbers = #tpu.dot_dimension_numbers<[1], [0], [0], [1], [0, 0, 1, 1], [], []>} : vector<128x32xbf16>, vector<32x256xbf16>, vector<128x256xf32> -> vector<128x256xf32>
    %c0_3 = arith.constant 0 : index
    %c0_4 = arith.constant 0 : index
    %3 = vector.load %arg3[%c0_3, %c0_4] : memref<1x256xf32, #tpu.memory_space<vmem>>, vector<1x256xf32>
    %4 = vector.broadcast %3 : vector<1x256xf32> to vector<128x256xf32>
    %5 = arith.addf %2, %4 : vector<128x256xf32>
    %cst_5 = arith.constant 0.000000e+00 : f32
    %6 = vector.broadcast %cst_5 : f32 to vector<128x256xf32>
    %7 = arith.maximumf %5, %6 : vector<128x256xf32>
    %8 = arith.truncf %7 : vector<128x256xf32> to vector<128x256xbf16>
    %c0_6 = arith.constant 0 : index
    %c0_7 = arith.constant 0 : index
    %9 = vector.load %arg4[%c0_6, %c0_7] : memref<256x128xbf16, #tpu.memory_space<vmem>>, vector<256x128xbf16>
    %cst_8 = arith.constant dense<0.000000e+00> : vector<128x128xf32>
    %10 = tpu.matmul %8, %9, %cst_8 {dimension_numbers = #tpu.dot_dimension_numbers<[1], [0], [0], [1], [0, 0, 1, 1], [], []>} : vector<128x256xbf16>, vector<256x128xbf16>, vector<128x128xf32> -> vector<128x128xf32>
    %c0_9 = arith.constant 0 : index
    %c0_10 = arith.constant 0 : index
    %11 = vector.load %arg5[%c0_9, %c0_10] : memref<1x128xf32, #tpu.memory_space<vmem>>, vector<1x128xf32>
    %12 = vector.broadcast %11 : vector<1x128xf32> to vector<128x128xf32>
    %13 = arith.addf %10, %12 : vector<128x128xf32>
    %cst_11 = arith.constant 0.000000e+00 : f32
    %14 = vector.broadcast %cst_11 : f32 to vector<128x128xf32>
    %15 = arith.maximumf %13, %14 : vector<128x128xf32>
    %c0_12 = arith.constant 0 : index
    %c0_13 = arith.constant 0 : index
    %16 = vector.load %arg6[%c0_12, %c0_13] : memref<1x128xf32, #tpu.memory_space<vmem>>, vector<1x128xf32>
    %17 = vector.broadcast %16 : vector<1x128xf32> to vector<128x128xf32>
    %18 = arith.mulf %15, %17 : vector<128x128xf32>
    %cst_14 = arith.constant dense<0.000000e+00> : vector<128xf32>
    %19 = vector.multi_reduction <add>, %18, %cst_14 [1] : vector<128x128xf32> to vector<128xf32>
    %c0_15 = arith.constant 0 : index
    %20 = memref.load %arg7[%c0_15] : memref<1xf32, #tpu.memory_space<smem>>
    %21 = vector.broadcast %20 : f32 to vector<128xf32>
    %22 = arith.addf %19, %21 : vector<128xf32>
    %23 = vector.shape_cast %22 : vector<128xf32> to vector<1x128xf32>
    %c0_16 = arith.constant 0 : index
    %c0_17 = arith.constant 0 : index
    %24 = vector.load %arg8[%c0_16, %c0_17] : memref<1x128xf32, #tpu.memory_space<vmem>>, vector<1x128xf32>
    tpu.vector_store %arg8[%c0_16, %c0_17], %23 {strides = array<i32>} : memref<1x128xf32, #tpu.memory_space<vmem>>, vector<1x128xf32>,
    return
  }
  func.func @transform_0(%arg0: i32) -> (i32, i32) {
    %c0_i32 = arith.constant 0 : i32
    %c0_i32_0 = arith.constant 0 : i32
    return %arg0, %c0_i32 : i32, i32
  }
  func.func @transform_1(%arg0: i32) -> (i32, i32) {
    %c0_i32 = arith.constant 0 : i32
    %c0_i32_0 = arith.constant 0 : i32
    %c0_i32_1 = arith.constant 0 : i32
    return %c0_i32, %c0_i32_0 : i32, i32
  }
  func.func @transform_2(%arg0: i32) -> (i32, i32) {
    %c0_i32 = arith.constant 0 : i32
    %c0_i32_0 = arith.constant 0 : i32
    %c0_i32_1 = arith.constant 0 : i32
    return %c0_i32, %c0_i32_0 : i32, i32
  }
  func.func @transform_3(%arg0: i32) -> (i32, i32) {
    %c0_i32 = arith.constant 0 : i32
    %c0_i32_0 = arith.constant 0 : i32
    %c0_i32_1 = arith.constant 0 : i32
    return %c0_i32, %c0_i32_0 : i32, i32
  }
  func.func @transform_4(%arg0: i32) -> (i32, i32) {
    %c0_i32 = arith.constant 0 : i32
    %c0_i32_0 = arith.constant 0 : i32
    %c0_i32_1 = arith.constant 0 : i32
    return %c0_i32, %c0_i32_0 : i32, i32
  }
  func.func @transform_5(%arg0: i32) -> (i32, i32) {
    %c0_i32 = arith.constant 0 : i32
    %c0_i32_0 = arith.constant 0 : i32
    %c0_i32_1 = arith.constant 0 : i32
    return %c0_i32, %c0_i32_0 : i32, i32
  }
  func.func @transform_6(%arg0: i32) -> i32 {
    %c0_i32 = arith.constant 0 : i32
    %c0_i32_0 = arith.constant 0 : i32
    return %c0_i32 : i32
  }
  func.func @transform_7(%arg0: i32) -> (i32, i32) {
    %c0_i32 = arith.constant 0 : i32
    %c0_i32_0 = arith.constant 0 : i32
    return %c0_i32, %arg0 : i32, i32
  }
}

</mosaic_0001>

<llo_original>
// kernel: tpu_custom_call.1
$region0: #{tpu_custom_call.1}
  #allocation0 [shape = 'u32[]', space=smem, size = 0x4, offset = 0x4, fixed_abs, tag = 'smem constant byte address 0x4 - core index']
  #allocation1 [shape = 'u32[72,128]{1,0:T(1,128)}', space=vmem, size = 0x9000, scoped, tag = 'internal scratch']
  #allocation2 [shape = 'f32[1]{0:T(128)S(6)}', space=smem, size = 0x200, scoped, tag = 'scoped memory for tpu_custom_call.1']
  %s0 = inlined_call_operand.vmem [shape: bf16[128,32], index: 0, kind: input, shape index: {}]
  %s1 = inlined_call_operand.vmem [shape: bf16[32,256], index: 1, kind: input, shape index: {}]
  %s2 = inlined_call_operand.vmem [shape: f32[1,256], index: 2, kind: input, shape index: {}]
  %s3 = inlined_call_operand.hbm [shape: bf16[256,128], index: 3, kind: input, shape index: {}]
  %s4 = inlined_call_operand.vmem [shape: f32[1,128], index: 4, kind: input, shape index: {}]
  %s5 = inlined_call_operand.vmem [shape: f32[1,128], index: 5, kind: input, shape index: {}]
  %s6 = inlined_call_operand.<no memory space> [shape: f32[1], index: 6, kind: input, shape index: {}]
  %s7 = inlined_call_operand.hbm [shape: f32[1,128], index: 7, kind: output, shape index: {}]
  %s8 = sld [smem:[#allocation0]]
  $region42: #{tpu_custom_call.1} parent=0
    _
  %s10 = ssub.s32 1, %s8
  %s11 = scalar_select 0, %s10, %s8
  %12 = sst [smem:[#allocation2]] %s6
  $region1: #{tpu_custom_call.1} parent=0
    #allocation3 [shape = 'u8[65536]{0}', space=vmem, size = 0x10000, scoped, tag = 'input window, operand 3, single buffered']
    #allocation4 [shape = 's32[1]{0}', space=sflag, size = 0x4, scoped, tag = 'scoped memory for tpu_custom_call.1']
    #allocation5 [shape = 's32[1]{0}', space=sflag, size = 0x4, scoped, tag = 'scoped memory for tpu_custom_call.1']
    #allocation6 [shape = 'u8[512]{0}', space=vmem, size = 0x400, scoped, tag = 'output window, operand 0, single buffered']
    %13 = vsyncpa [#allocation4], 0
    %14 = vsyncpa [#allocation5], 0
    // Predicated region
    $region2: #{tpu_custom_call.1} parent=1 // pred_check
      _
    $region3: #{tpu_custom_call.1} parent=1 // pred_check_branch
      %16 = sbr.rel (0) target = $region5
    $region4: #{tpu_custom_call.1} parent=1 // pred_region
      _
    $region5: #{tpu_custom_call.1} parent=1 // pred_fallthru
      _
    // Predicated region
    $region6: #{tpu_custom_call.1} parent=1 // pred_check
      _
    $region7: #{tpu_custom_call.1} parent=1 // pred_check_branch
      %18 = sbr.rel (0) target = $region9
    $region8: #{tpu_custom_call.1} parent=1 // pred_region
      _
    $region9: #{tpu_custom_call.1} parent=1 // pred_fallthru
      _
    // Predicated region
    $region10: #{tpu_custom_call.1} parent=1 // pred_check
      _
    $region11: #{tpu_custom_call.1} parent=1 // pred_check_branch
      %20 = sbr.rel (0) target = $region13
    $region12: #{tpu_custom_call.1} parent=1 // pred_region
      _
    $region13: #{tpu_custom_call.1} parent=1 // pred_fallthru
      _
    // Predicated region
    $region14: #{tpu_custom_call.1} parent=1 // pred_check
      _
    $region15: #{tpu_custom_call.1} parent=1 // pred_check_branch
      %22 = sbr.rel (0) target = $region17
    $region16: #{tpu_custom_call.1} parent=1 // pred_region
      %24 = vsyncadd [#allocation4], 0
      %s25 = sshll.u32 %s3, 4
      %s26 = int_to_ptr.hbm [resolvable:$true] %s25
      %s27 = sshll.u32 [#allocation3], 4
      %s28 = int_to_ptr.vmem [resolvable:$true] %s27
      %33 = dma.hbm_to_vmem [thread:$0]  %s26, 2048, %s28, [#allocation4], 64, 64, 4
    $region17: #{tpu_custom_call.1} parent=1 // pred_fallthru
      _
    // Predicated region
    $region18: #{tpu_custom_call.1} parent=1 // pred_check
      _
    $region19: #{tpu_custom_call.1} parent=1 // pred_check_branch
      %35 = sbr.rel (0) target = $region21
    $region20: #{tpu_custom_call.1} parent=1 // pred_region
      _
    $region21: #{tpu_custom_call.1} parent=1 // pred_fallthru
      _
    // Predicated region
    $region22: #{tpu_custom_call.1} parent=1 // pred_check
      _
    $region23: #{tpu_custom_call.1} parent=1 // pred_check_branch
      %37 = sbr.rel (0) target = $region25
    $region24: #{tpu_custom_call.1} parent=1 // pred_region
      _
    $region25: #{tpu_custom_call.1} parent=1 // pred_fallthru
      _
    // Predicated region
    $region26: #{tpu_custom_call.1} parent=1 // pred_check
      _
    $region27: #{tpu_custom_call.1} parent=1 // pred_check_branch
      %39 = sbr.rel (0) target = $region29
    $region28: #{tpu_custom_call.1} parent=1 // pred_region
      _
    $region29: #{tpu_custom_call.1} parent=1 // pred_fallthru
      _
    // Predicated region
    $region30: #{tpu_custom_call.1} parent=1 // pred_check
      _
    $region31: #{tpu_custom_call.1} parent=1 // pred_check_branch
      %41 = sbr.rel (0) target = $region33
    $region32: #{tpu_custom_call.1} parent=1 // pred_region
      %43 = dma.done [#allocation4], 2048
    $region33: #{tpu_custom_call.1} parent=1 // pred_fallthru
      _
    %v45 = vld [vmem:[%s0] sm:$0xf]
    %v46 = vld [vmem:[%s0 + $0x4] sm:$0xf]
    %v47 = vld [vmem:[%s0 + $0x8] sm:$0xf]
    %v48 = vld [vmem:[%s0 + $0xc] sm:$0xf]
    %v49 = vld [vmem:[%s0 + $0x10] sm:$0xf]
    %v50 = vld [vmem:[%s0 + $0x14] sm:$0xf]
    %v51 = vld [vmem:[%s0 + $0x18] sm:$0xf]
    %v52 = vld [vmem:[%s0 + $0x1c] sm:$0xf]
    %v53 = vld [vmem:[%s0 + $0x20] sm:$0xf]
    %v54 = vld [vmem:[%s0 + $0x24] sm:$0xf]
    %v55 = vld [vmem:[%s0 + $0x28] sm:$0xf]
    %v56 = vld [vmem:[%s0 + $0x2c] sm:$0xf]
    %v57 = vld [vmem:[%s0 + $0x30] sm:$0xf]
    %v58 = vld [vmem:[%s0 + $0x34] sm:$0xf]
    %v59 = vld [vmem:[%s0 + $0x38] sm:$0xf]
    %v60 = vld [vmem:[%s0 + $0x3c] sm:$0xf]
    %v61 = vld [vmem:[%s1] sm:$0xff]
    %v62 = vld [vmem:[%s1 + $0x8] sm:$0xff]
    %v63 = vld [vmem:[%s1 + $0x10] sm:$0xff]
    %v64 = vld [vmem:[%s1 + $0x18] sm:$0xff]
    %v65 = vld [vmem:[%s2] sm:$0x3]
    %v67 = vperm.slane %v65, 0
    %v68 = vperm.slane %v65, 1
    %v87 = vunpack.c.l.b16 %v45
    %v88 = vunpack.c.l.b16 %v46
    %v89 = vunpack.c.l.b16 %v47
    %v90 = vunpack.c.l.b16 %v48
    %v91 = vunpack.c.l.b16 %v49
    %v92 = vunpack.c.l.b16 %v50
    %v93 = vunpack.c.l.b16 %v51
    %v94 = vunpack.c.l.b16 %v52
    %v95 = vunpack.c.l.b16 %v53
    %v96 = vunpack.c.l.b16 %v54
    %v97 = vunpack.c.l.b16 %v55
    %v98 = vunpack.c.l.b16 %v56
    %v99 = vunpack.c.l.b16 %v57
    %v100 = vunpack.c.l.b16 %v58
    %v101 = vunpack.c.l.b16 %v59
    %v102 = vunpack.c.l.b16 %v60
    %v103 = vpack.c.b16 %v88, %v87
    %v104 = vpack.c.b16 %v90, %v89
    %v105 = vpack.c.b16 %v92, %v91
    %v106 = vpack.c.b16 %v94, %v93
    %v107 = vpack.c.b16 %v96, %v95
    %v108 = vpack.c.b16 %v98, %v97
    %v109 = vpack.c.b16 %v100, %v99
    %v110 = vpack.c.b16 %v102, %v101
    %v115 = vunpack.c.l.b16 %v61
    %v116 = vunpack.c.h.b16 %v61
    %v117 = vunpack.c.l.b16 %v62
    %v118 = vunpack.c.h.b16 %v62
    %v119 = vunpack.c.l.b16 %v63
    %v120 = vunpack.c.h.b16 %v63
    %v121 = vunpack.c.l.b16 %v64
    %v122 = vunpack.c.h.b16 %v64
    %v123 = vpack.c.b16 %v117, %v115
    %v124 = vpack.c.b16 %v118, %v116
    %v125 = vpack.c.b16 %v121, %v119
    %v126 = vpack.c.b16 %v122, %v120
    %vm131 = vcmask 261120
    %v133 = vsel %vm131, %v103, 0
    %v136 = vsel %vm131, %v104, 0
    %v139 = vsel %vm131, %v105, 0
    %v142 = vsel %vm131, %v106, 0
    %v145 = vsel %vm131, %v107, 0
    %v148 = vsel %vm131, %v108, 0
    %v151 = vsel %vm131, %v109, 0
    %v154 = vsel %vm131, %v110, 0
    %156 = vmatpush.bf16.msra.mxu0 0
    %157 = vmatpush.bf16.msra.mxu0 0
    %158 = vmatpush.bf16.msra.mxu0 0
    %159 = vmatpush.bf16.msra.mxu0 0
    %160 = vmatpush.bf16.msra.mxu0 0
    %161 = vmatpush.bf16.msra.mxu0 0
    %162 = vmatpush.bf16.msra.mxu0 %v125
    %163 = vmatpush.bf16.msra.mxu0 %v123
    %164 = vmatmul.bf16.gmra.mxu0 %v133
    %v165 = vpop.f32.mrf.mxu0
    %v166 = vadd.f32 %v67, %v165
    %v167 = vpop.f32.mrf.mxu0
    %v168 = vadd.f32 %v67, %v167
    %169 = vmatmul.bf16.gmra.mxu0 %v136
    %v170 = vpop.f32.mrf.mxu0
    %v171 = vadd.f32 %v67, %v170
    %v172 = vpop.f32.mrf.mxu0
    %v173 = vadd.f32 %v67, %v172
    %174 = vmatmul.bf16.gmra.mxu0 %v139
    %v175 = vpop.f32.mrf.mxu0
    %v176 = vadd.f32 %v67, %v175
    %v177 = vpop.f32.mrf.mxu0
    %v178 = vadd.f32 %v67, %v177
    %179 = vmatmul.bf16.gmra.mxu0 %v142
    %v180 = vpop.f32.mrf.mxu0
    %v181 = vadd.f32 %v67, %v180
    %v182 = vpop.f32.mrf.mxu0
    %v183 = vadd.f32 %v67, %v182
    %184 = vmatmul.bf16.gmra.mxu0 %v145
    %v185 = vpop.f32.mrf.mxu0
    %v186 = vadd.f32 %v67, %v185
    %v187 = vpop.f32.mrf.mxu0
    %v188 = vadd.f32 %v67, %v187
    %189 = vmatmul.bf16.gmra.mxu0 %v148
    %v190 = vpop.f32.mrf.mxu0
    %v191 = vadd.f32 %v67, %v190
    %v192 = vpop.f32.mrf.mxu0
    %v193 = vadd.f32 %v67, %v192
    %194 = vmatmul.bf16.gmra.mxu0 %v151
    %v195 = vpop.f32.mrf.mxu0
    %v196 = vadd.f32 %v67, %v195
    %v197 = vpop.f32.mrf.mxu0
    %v198 = vadd.f32 %v67, %v197
    %199 = vmatmul.bf16.gmra.mxu0 %v154
    %v200 = vpop.f32.mrf.mxu0
    %v201 = vadd.f32 %v67, %v200
    %v202 = vpop.f32.mrf.mxu0
    %v203 = vadd.f32 %v67, %v202
    %204 = vdwg.mxu0
    %205 = vmatpush.bf16.msra.mxu0 0
    %206 = vmatpush.bf16.msra.mxu0 0
    %207 = vmatpush.bf16.msra.mxu0 0
    %208 = vmatpush.bf16.msra.mxu0 0
    %209 = vmatpush.bf16.msra.mxu0 0
    %210 = vmatpush.bf16.msra.mxu0 0
    %211 = vmatpush.bf16.msra.mxu0 %v126
    %212 = vmatpush.bf16.msra.mxu0 %v124
    %213 = vmatmul.bf16.gmra.mxu0 %v133
    %v214 = vpop.f32.mrf.mxu0
    %v215 = vadd.f32 %v68, %v214
    %v216 = vpop.f32.mrf.mxu0
    %v217 = vadd.f32 %v68, %v216
    %218 = vmatmul.bf16.gmra.mxu0 %v136
    %v219 = vpop.f32.mrf.mxu0
    %v220 = vadd.f32 %v68, %v219
    %v221 = vpop.f32.mrf.mxu0
    %v222 = vadd.f32 %v68, %v221
    %223 = vmatmul.bf16.gmra.mxu0 %v139
    %v224 = vpop.f32.mrf.mxu0
    %v225 = vadd.f32 %v68, %v224
    %v226 = vpop.f32.mrf.mxu0
    %v227 = vadd.f32 %v68, %v226
    %228 = vmatmul.bf16.gmra.mxu0 %v142
    %v229 = vpop.f32.mrf.mxu0
    %v230 = vadd.f32 %v68, %v229
    %v231 = vpop.f32.mrf.mxu0
    %v232 = vadd.f32 %v68, %v231
    %233 = vmatmul.bf16.gmra.mxu0 %v145
    %v234 = vpop.f32.mrf.mxu0
    %v235 = vadd.f32 %v68, %v234
    %v236 = vpop.f32.mrf.mxu0
    %v237 = vadd.f32 %v68, %v236
    %238 = vmatmul.bf16.gmra.mxu0 %v148
    %v239 = vpop.f32.mrf.mxu0
    %v240 = vadd.f32 %v68, %v239
    %v241 = vpop.f32.mrf.mxu0
    %v242 = vadd.f32 %v68, %v241
    %243 = vmatmul.bf16.gmra.mxu0 %v151
    %v244 = vpop.f32.mrf.mxu0
    %v245 = vadd.f32 %v68, %v244
    %v246 = vpop.f32.mrf.mxu0
    %v247 = vadd.f32 %v68, %v246
    %248 = vmatmul.bf16.gmra.mxu0 %v154
    %v249 = vpop.f32.mrf.mxu0
    %v250 = vadd.f32 %v68, %v249
    %v251 = vpop.f32.mrf.mxu0
    %v252 = vadd.f32 %v68, %v251
    %253 = vdwg.mxu0
    %v254 = vmax.f32 %v166, 0.0
    %v255 = vmax.f32 %v215, 0.0
    %v256 = vmax.f32 %v168, 0.0
    %v257 = vmax.f32 %v217, 0.0
    %v258 = vmax.f32 %v171, 0.0
    %v259 = vmax.f32 %v220, 0.0
    %v260 = vmax.f32 %v173, 0.0
    %v261 = vmax.f32 %v222, 0.0
    %v262 = vmax.f32 %v176, 0.0
    %v263 = vmax.f32 %v225, 0.0
    %v264 = vmax.f32 %v178, 0.0
    %v265 = vmax.f32 %v227, 0.0
    %v266 = vmax.f32 %v181, 0.0
    %v267 = vmax.f32 %v230, 0.0
    %v268 = vmax.f32 %v183, 0.0
    %v269 = vmax.f32 %v232, 0.0
    %v270 = vmax.f32 %v186, 0.0
    %v271 = vmax.f32 %v235, 0.0
    %v272 = vmax.f32 %v188, 0.0
    %v273 = vmax.f32 %v237, 0.0
    %v274 = vmax.f32 %v191, 0.0
    %v275 = vmax.f32 %v240, 0.0
    %v276 = vmax.f32 %v193, 0.0
    %v277 = vmax.f32 %v242, 0.0
    %v278 = vmax.f32 %v196, 0.0
    %v279 = vmax.f32 %v245, 0.0
    %v280 = vmax.f32 %v198, 0.0
    %v281 = vmax.f32 %v247, 0.0
    %v282 = vmax.f32 %v201, 0.0
    %v283 = vmax.f32 %v250, 0.0
    %v284 = vmax.f32 %v203, 0.0
    %v285 = vmax.f32 %v252, 0.0
    %v286 = vpack.c.bf16 %v256, %v254
    %v287 = vpack.c.bf16 %v257, %v255
    %v288 = vpack.c.bf16 %v260, %v258
    %v289 = vpack.c.bf16 %v261, %v259
    %v290 = vpack.c.bf16 %v264, %v262
    %v291 = vpack.c.bf16 %v265, %v263
    %v292 = vpack.c.bf16 %v268, %v266
    %v293 = vpack.c.bf16 %v269, %v267
    %v294 = vpack.c.bf16 %v272, %v270
    %v295 = vpack.c.bf16 %v273, %v271
    %v296 = vpack.c.bf16 %v276, %v274
    %v297 = vpack.c.bf16 %v277, %v275
    %v298 = vpack.c.bf16 %v280, %v278
    %v299 = vpack.c.bf16 %v281, %v279
    %v300 = vpack.c.bf16 %v284, %v282
    %v301 = vpack.c.bf16 %v285, %v283
    %v302 = vld [vmem:[#allocation3] sm:$0xf]
    %v303 = vld [vmem:[#allocation3 + $0x4] sm:$0xf]
    %v304 = vld [vmem:[#allocation3 + $0x8] sm:$0xf]
    %v305 = vld [vmem:[#allocation3 + $0xc] sm:$0xf]
    %v306 = vld [vmem:[#allocation3 + $0x10] sm:$0xf]
    %v307 = vld [vmem:[#allocation3 + $0x14] sm:$0xf]
    %v308 = vld [vmem:[#allocation3 + $0x18] sm:$0xf]
    %v309 = vld [vmem:[#allocation3 + $0x1c] sm:$0xf]
    %v310 = vld [vmem:[#allocation3 + $0x20] sm:$0xf]
    %v311 = vld [vmem:[#allocation3 + $0x24] sm:$0xf]
    %v312 = vld [vmem:[#allocation3 + $0x28] sm:$0xf]
    %v313 = vld [vmem:[#allocation3 + $0x2c] sm:$0xf]
    %v314 = vld [vmem:[#allocation3 + $0x30] sm:$0xf]
    %v315 = vld [vmem:[#allocation3 + $0x34] sm:$0xf]
    %v316 = vld [vmem:[#allocation3 + $0x38] sm:$0xf]
    %v317 = vld [vmem:[#allocation3 + $0x3c] sm:$0xf]
    %v318 = vld [vmem:[#allocation3 + $0x40] sm:$0xf]
    %v319 = vld [vmem:[#allocation3 + $0x44] sm:$0xf]
    %v320 = vld [vmem:[#allocation3 + $0x48] sm:$0xf]
    %v321 = vld [vmem:[#allocation3 + $0x4c] sm:$0xf]
    %v322 = vld [vmem:[#allocation3 + $0x50] sm:$0xf]
    %v323 = vld [vmem:[#allocation3 + $0x54] sm:$0xf]
    %v324 = vld [vmem:[#allocation3 + $0x58] sm:$0xf]
    %v325 = vld [vmem:[#allocation3 + $0x5c] sm:$0xf]
    %v326 = vld [vmem:[#allocation3 + $0x60] sm:$0xf]
    %v327 = vld [vmem:[#allocation3 + $0x64] sm:$0xf]
    %v328 = vld [vmem:[#allocation3 + $0x68] sm:$0xf]
    %v329 = vld [vmem:[#allocation3 + $0x6c] sm:$0xf]
    %v330 = vld [vmem:[#allocation3 + $0x70] sm:$0xf]
    %v331 = vld [vmem:[#allocation3 + $0x74] sm:$0xf]
    %v332 = vld [vmem:[#allocation3 + $0x78] sm:$0xf]
    %v333 = vld [vmem:[#allocation3 + $0x7c] sm:$0xf]
    %v334 = vld [vmem:[%s4] sm:$0x1]
    %v336 = vperm.slane %v334, 0
    %v370 = vunpack.c.l.b16 %v302
    %v371 = vunpack.c.l.b16 %v303
    %v372 = vunpack.c.l.b16 %v304
    %v373 = vunpack.c.l.b16 %v305
    %v374 = vunpack.c.l.b16 %v306
    %v375 = vunpack.c.l.b16 %v307
    %v376 = vunpack.c.l.b16 %v308
    %v377 = vunpack.c.l.b16 %v309
    %v378 = vunpack.c.l.b16 %v310
    %v379 = vunpack.c.l.b16 %v311
    %v380 = vunpack.c.l.b16 %v312
    %v381 = vunpack.c.l.b16 %v313
    %v382 = vunpack.c.l.b16 %v314
    %v383 = vunpack.c.l.b16 %v315
    %v384 = vunpack.c.l.b16 %v316
    %v385 = vunpack.c.l.b16 %v317
    %v386 = vunpack.c.l.b16 %v318
    %v387 = vunpack.c.l.b16 %v319
    %v388 = vunpack.c.l.b16 %v320
    %v389 = vunpack.c.l.b16 %v321
    %v390 = vunpack.c.l.b16 %v322
    %v391 = vunpack.c.l.b16 %v323
    %v392 = vunpack.c.l.b16 %v324
    %v393 = vunpack.c.l.b16 %v325
    %v394 = vunpack.c.l.b16 %v326
    %v395 = vunpack.c.l.b16 %v327
    %v396 = vunpack.c.l.b16 %v328
    %v397 = vunpack.c.l.b16 %v329
    %v398 = vunpack.c.l.b16 %v330
    %v399 = vunpack.c.l.b16 %v331
    %v400 = vunpack.c.l.b16 %v332
    %v401 = vunpack.c.l.b16 %v333
    %v402 = vpack.c.b16 %v371, %v370
    %v403 = vpack.c.b16 %v373, %v372
    %v404 = vpack.c.b16 %v375, %v374
    %v405 = vpack.c.b16 %v377, %v376
    %v406 = vpack.c.b16 %v379, %v378
    %v407 = vpack.c.b16 %v381, %v380
    %v408 = vpack.c.b16 %v383, %v382
    %v409 = vpack.c.b16 %v385, %v384
    %v410 = vpack.c.b16 %v387, %v386
    %v411 = vpack.c.b16 %v389, %v388
    %v412 = vpack.c.b16 %v391, %v390
    %v413 = vpack.c.b16 %v393, %v392
    %v414 = vpack.c.b16 %v395, %v394
    %v415 = vpack.c.b16 %v397, %v396
    %v416 = vpack.c.b16 %v399, %v398
    %v417 = vpack.c.b16 %v401, %v400
    %434 = vmatpush.bf16.msra.mxu0 %v409
    %435 = vmatpush.bf16.msra.mxu0 %v408
    %436 = vmatpush.bf16.msra.mxu0 %v407
    %437 = vmatpush.bf16.msra.mxu0 %v406
    %438 = vmatpush.bf16.msra.mxu0 %v405
    %439 = vmatpush.bf16.msra.mxu0 %v404
    %440 = vmatpush.bf16.msra.mxu0 %v403
    %441 = vmatpush.bf16.msra.mxu0 %v402
    %442 = vmatmul.bf16.gmra.mxu0 %v286
    %v443 = vpop.f32.mrf.mxu0
    %v444 = vadd.f32 %v336, %v443
    %v445 = vpop.f32.mrf.mxu0
    %v446 = vadd.f32 %v336, %v445
    %447 = vmatmul.bf16.gmra.mxu0 %v288
    %v448 = vpop.f32.mrf.mxu0
    %v449 = vadd.f32 %v336, %v448
    %v450 = vpop.f32.mrf.mxu0
    %v451 = vadd.f32 %v336, %v450
    %452 = vmatmul.bf16.gmra.mxu0 %v290
    %v453 = vpop.f32.mrf.mxu0
    %v454 = vadd.f32 %v336, %v453
    %v455 = vpop.f32.mrf.mxu0
    %v456 = vadd.f32 %v336, %v455
    %457 = vmatmul.bf16.gmra.mxu0 %v292
    %v458 = vpop.f32.mrf.mxu0
    %v459 = vadd.f32 %v336, %v458
    %v460 = vpop.f32.mrf.mxu0
    %v461 = vadd.f32 %v336, %v460
    %462 = vmatmul.bf16.gmra.mxu0 %v294
    %v463 = vpop.f32.mrf.mxu0
    %v464 = vadd.f32 %v336, %v463
    %v465 = vpop.f32.mrf.mxu0
    %v466 = vadd.f32 %v336, %v465
    %467 = vmatmul.bf16.gmra.mxu0 %v296
    %v468 = vpop.f32.mrf.mxu0
    %v469 = vadd.f32 %v336, %v468
    %v470 = vpop.f32.mrf.mxu0
    %v471 = vadd.f32 %v336, %v470
    %472 = vmatmul.bf16.gmra.mxu0 %v298
    %v473 = vpop.f32.mrf.mxu0
    %v474 = vadd.f32 %v336, %v473
    %v475 = vpop.f32.mrf.mxu0
    %v476 = vadd.f32 %v336, %v475
    %477 = vmatmul.bf16.gmra.mxu0 %v300
    %v478 = vpop.f32.mrf.mxu0
    %v479 = vadd.f32 %v336, %v478
    %v480 = vpop.f32.mrf.mxu0
    %v481 = vadd.f32 %v336, %v480
    %482 = vdwg.mxu0
    %483 = vmatpush.bf16.msra.mxu0 %v417
    %484 = vmatpush.bf16.msra.mxu0 %v416
    %485 = vmatpush.bf16.msra.mxu0 %v415
    %486 = vmatpush.bf16.msra.mxu0 %v414
    %487 = vmatpush.bf16.msra.mxu0 %v413
    %488 = vmatpush.bf16.msra.mxu0 %v412
    %489 = vmatpush.bf16.msra.mxu0 %v411
    %490 = vmatpush.bf16.msra.mxu0 %v410
    %491 = vmatmul.bf16.gmra.mxu0 %v287
    %v492 = vpop.f32.mrf.mxu0
    %v493 = vadd.f32 %v444, %v492
    %v494 = vpop.f32.mrf.mxu0
    %v495 = vadd.f32 %v446, %v494
    %496 = vmatmul.bf16.gmra.mxu0 %v289
    %v497 = vpop.f32.mrf.mxu0
    %v498 = vadd.f32 %v449, %v497
    %v499 = vpop.f32.mrf.mxu0
    %v500 = vadd.f32 %v451, %v499
    %501 = vmatmul.bf16.gmra.mxu0 %v291
    %v502 = vpop.f32.mrf.mxu0
    %v503 = vadd.f32 %v454, %v502
    %v504 = vpop.f32.mrf.mxu0
    %v505 = vadd.f32 %v456, %v504
    %506 = vmatmul.bf16.gmra.mxu0 %v293
    %v507 = vpop.f32.mrf.mxu0
    %v508 = vadd.f32 %v459, %v507
    %v509 = vpop.f32.mrf.mxu0
    %v510 = vadd.f32 %v461, %v509
    %511 = vmatmul.bf16.gmra.mxu0 %v295
    %v512 = vpop.f32.mrf.mxu0
    %v513 = vadd.f32 %v464, %v512
    %v514 = vpop.f32.mrf.mxu0
    %v515 = vadd.f32 %v466, %v514
    %516 = vmatmul.bf16.gmra.mxu0 %v297
    %v517 = vpop.f32.mrf.mxu0
    %v518 = vadd.f32 %v469, %v517
    %v519 = vpop.f32.mrf.mxu0
    %v520 = vadd.f32 %v471, %v519
    %521 = vmatmul.bf16.gmra.mxu0 %v299
    %v522 = vpop.f32.mrf.mxu0
    %v523 = vadd.f32 %v474, %v522
    %v524 = vpop.f32.mrf.mxu0
    %v525 = vadd.f32 %v476, %v524
    %526 = vmatmul.bf16.gmra.mxu0 %v301
    %v527 = vpop.f32.mrf.mxu0
    %v528 = vadd.f32 %v479, %v527
    %v529 = vpop.f32.mrf.mxu0
    %v530 = vadd.f32 %v481, %v529
    %531 = vdwg.mxu0
    %v532 = vmax.f32 %v493, 0.0
    %v533 = vmax.f32 %v495, 0.0
    %v534 = vmax.f32 %v498, 0.0
    %v535 = vmax.f32 %v500, 0.0
    %v536 = vmax.f32 %v503, 0.0
    %v537 = vmax.f32 %v505, 0.0
    %v538 = vmax.f32 %v508, 0.0
    %v539 = vmax.f32 %v510, 0.0
    %v540 = vmax.f32 %v513, 0.0
    %v541 = vmax.f32 %v515, 0.0
    %v542 = vmax.f32 %v518, 0.0
    %v543 = vmax.f32 %v520, 0.0
    %v544 = vmax.f32 %v523, 0.0
    %v545 = vmax.f32 %v525, 0.0
    %v546 = vmax.f32 %v528, 0.0
    %v547 = vmax.f32 %v530, 0.0
    %v548 = vld [vmem:[%s5] sm:$0x1]
    %v550 = vperm.slane %v548, 0
    %v552 = vmul.f32 %v532, %v550
    %v553 = vmul.f32 %v533, %v550
    %v554 = vmul.f32 %v534, %v550
    %v555 = vmul.f32 %v535, %v550
    %v556 = vmul.f32 %v536, %v550
    %v557 = vmul.f32 %v537, %v550
    %v558 = vmul.f32 %v538, %v550
    %v559 = vmul.f32 %v539, %v550
    %v560 = vmul.f32 %v540, %v550
    %v561 = vmul.f32 %v541, %v550
    %v562 = vmul.f32 %v542, %v550
    %v563 = vmul.f32 %v543, %v550
    %v564 = vmul.f32 %v544, %v550
    %v565 = vmul.f32 %v545, %v550
    %v566 = vmul.f32 %v546, %v550
    %v567 = vmul.f32 %v547, %v550
    %568 = vadd.xlane.f32.xlu0 %v552
    %v569 = vpop.xlane.xlu0 %568
    %570 = vadd.xlane.f32.xlu0 %v553
    %v571 = vpop.xlane.xlu0 %570
    %572 = vadd.xlane.f32.xlu0 %v554
    %v573 = vpop.xlane.xlu0 %572
    %574 = vadd.xlane.f32.xlu0 %v555
    %v575 = vpop.xlane.xlu0 %574
    %576 = vadd.xlane.f32.xlu0 %v556
    %v577 = vpop.xlane.xlu0 %576
    %578 = vadd.xlane.f32.xlu0 %v557
    %v579 = vpop.xlane.xlu0 %578
    %580 = vadd.xlane.f32.xlu0 %v558
    %v581 = vpop.xlane.xlu0 %580
    %582 = vadd.xlane.f32.xlu0 %v559
    %v583 = vpop.xlane.xlu0 %582
    %584 = vadd.xlane.f32.xlu0 %v560
    %v585 = vpop.xlane.xlu0 %584
    %586 = vadd.xlane.f32.xlu0 %v561
    %v587 = vpop.xlane.xlu0 %586
    %588 = vadd.xlane.f32.xlu0 %v562
    %v589 = vpop.xlane.xlu0 %588
    %590 = vadd.xlane.f32.xlu0 %v563
    %v591 = vpop.xlane.xlu0 %590
    %592 = vadd.xlane.f32.xlu0 %v564
    %v593 = vpop.xlane.xlu0 %592
    %594 = vadd.xlane.f32.xlu0 %v565
    %v595 = vpop.xlane.xlu0 %594
    %596 = vadd.xlane.f32.xlu0 %v566
    %v597 = vpop.xlane.xlu0 %596
    %598 = vadd.xlane.f32.xlu0 %v567
    %v599 = vpop.xlane.xlu0 %598
    %s600 = sld [smem:[#allocation2]]
    %v601 = vstv %s600
    %v602 = vadd.f32 %v569, %v601
    %v603 = vadd.f32 %v571, %v601
    %v604 = vadd.f32 %v573, %v601
    %v605 = vadd.f32 %v575, %v601
    %v606 = vadd.f32 %v577, %v601
    %v607 = vadd.f32 %v579, %v601
    %v608 = vadd.f32 %v581, %v601
    %v609 = vadd.f32 %v583, %v601
    %v610 = vadd.f32 %v585, %v601
    %v611 = vadd.f32 %v587, %v601
    %v612 = vadd.f32 %v589, %v601
    %v613 = vadd.f32 %v591, %v601
    %v614 = vadd.f32 %v593, %v601
    %v615 = vadd.f32 %v595, %v601
    %v616 = vadd.f32 %v597, %v601
    %v617 = vadd.f32 %v599, %v601
    %v634 = vlaneseq
    %v635 = vand.u32 %v634, 127
    %v636 = vperm.slane %v602, %v635
    %v637 = vadd.s32 %v635, 4294967288
    %v638 = vperm.slane %v603, %v637
    %vm639 = vcmask 130112
    %v640 = vsel %vm639, %v638, %v636
    %v641 = vadd.s32 %v635, 4294967280
    %v642 = vperm.slane %v604, %v641
    %vm643 = vcmask 195712
    %v644 = vsel %vm643, %v642, %v640
    %v645 = vadd.s32 %v635, 4294967272
    %v646 = vperm.slane %v605, %v645
    %vm647 = vcmask 261312
    %v648 = vsel %vm647, %v646, %v644
    %v649 = vadd.s32 %v635, 4294967264
    %v650 = vperm.slane %v606, %v649
    %vm651 = vcmask 326912
    %v652 = vsel %vm651, %v650, %v648
    %v653 = vadd.s32 %v635, 4294967256
    %v654 = vperm.slane %v607, %v653
    %vm655 = vcmask 392512
    %v656 = vsel %vm655, %v654, %v652
    %v657 = vadd.s32 %v635, 4294967248
    %v658 = vperm.slane %v608, %v657
    %vm659 = vcmask 458112
    %v660 = vsel %vm659, %v658, %v656
    %v661 = vadd.s32 %v635, 4294967240
    %v662 = vperm.slane %v609, %v661
    %vm663 = vcmask 523712
    %v664 = vsel %vm663, %v662, %v660
    %v665 = vadd.s32 %v635, 4294967232
    %v666 = vperm.slane %v610, %v665
    %vm667 = vcmask 589312
    %v668 = vsel %vm667, %v666, %v664
    %v669 = vadd.s32 %v635, 4294967224
    %v670 = vperm.slane %v611, %v669
    %vm671 = vcmask 654912
    %v672 = vsel %vm671, %v670, %v668
    %v673 = vadd.s32 %v635, 4294967216
    %v674 = vperm.slane %v612, %v673
    %vm675 = vcmask 720512
    %v676 = vsel %vm675, %v674, %v672
    %v677 = vadd.s32 %v635, 4294967208
    %v678 = vperm.slane %v613, %v677
    %vm679 = vcmask 786112
    %v680 = vsel %vm679, %v678, %v676
    %v681 = vadd.s32 %v635, 4294967200
    %v682 = vperm.slane %v614, %v681
    %vm683 = vcmask 851712
    %v684 = vsel %vm683, %v682, %v680
    %v685 = vadd.s32 %v635, 4294967192
    %v686 = vperm.slane %v615, %v685
    %vm687 = vcmask 917312
    %v688 = vsel %vm687, %v686, %v684
    %v689 = vadd.s32 %v635, 4294967184
    %v690 = vperm.slane %v616, %v689
    %vm691 = vcmask 982912
    %v692 = vsel %vm691, %v690, %v688
    %v693 = vadd.s32 %v635, 4294967176
    %v694 = vperm.slane %v617, %v693
    %vm695 = vcmask 1048512
    %v696 = vsel %vm695, %v694, %v692
    %698 = vst [vmem:[#allocation6] sm:$0x1] %v696
    // Predicated region
    $region34: #{tpu_custom_call.1} parent=1 // pred_check
      _
    $region35: #{tpu_custom_call.1} parent=1 // pred_check_branch
      %700 = sbr.rel (0) target = $region37
    $region36: #{tpu_custom_call.1} parent=1 // pred_region
      %702 = vsyncadd [#allocation5], 0
      %s704 = sshll.u32 [#allocation6], 4
      %s705 = int_to_ptr.vmem [resolvable:$true] %s704
      %s706 = sshll.u32 %s7, 4
      %s707 = int_to_ptr.hbm [resolvable:$true] %s706
      %709 = dma.vmem_to_hbm [thread:$0]  %s705, 16, %s707, [#allocation5]
    $region37: #{tpu_custom_call.1} parent=1 // pred_fallthru
      _
    // Predicated region
    $region38: #{tpu_custom_call.1} parent=1 // pred_check
      _
    $region39: #{tpu_custom_call.1} parent=1 // pred_check_branch
      %711 = sbr.rel (0) target = $region41
    $region40: #{tpu_custom_call.1} parent=1 // pred_region
      %713 = dma.done [#allocation5], 16
    $region41: #{tpu_custom_call.1} parent=1 // pred_fallthru
      _
    %714 = vsyncpa [#allocation4], 1
    %715 = vsyncpa [#allocation5], 1

</llo_original>
